<compile_context>
chip_gen: v6e
topology: v6e:2x2x1
jax: 0.10.0
libtpu: 0.0.40
codegen_flags: <defaults>
</compile_context>

<pallas_src>
import jax
import jax.numpy as jnp
from jax.experimental import pallas as pl
from jax.experimental.pallas import tpu as pltpu

_LANES = 128
_TILE_BYTES = 4 << 20     # 4 MiB per pipeline buffer (8192 rows for f32, 16384 for bf16)
_VMEM_LIMIT = 32 << 20    # explicit scoped-VMEM limit: in+out double-buffered (16 MiB)
                          # plus scratch fits on every generation (v5e default is only 16 MiB)


def _row_quantum(dtype):
    # sublane packing quantum: (8,128) f32, (16,128) bf16/f16, (32,128) 8-bit
    return {4: 8, 2: 16, 1: 32}.get(jnp.dtype(dtype).itemsize, 8)


def _arelu_kernel(alpha_ref, beta_ref, x_ref, o_ref):
    x = x_ref[...]
    a = alpha_ref[0].astype(x.dtype)
    b = beta_ref[0].astype(x.dtype)
    coef = jnp.where(x >= 0, b, a)          # one vcmp+vsel
    o_ref[...] = (x * coef).astype(o_ref.dtype)   # one vmul


def _arelu_elementwise(x, a, b):
    # Tiny jnp fallback (ragged tails / inputs too small for a 128-lane slab).
    a = a.astype(x.dtype)
    b = b.astype(x.dtype)
    return jnp.where(x >= 0, x * b, x * a)


@jax.jit
def arelu(x, alpha, beta):
    """AReLU forward. x: any-shape float array (NCHW here). alpha, beta: (1,) params."""
    orig_shape = x.shape
    dtype = x.dtype
    total = x.size

    # Hoist parameter math out of the tiled kernel (would otherwise rerun per grid step).
    a = jnp.clip(alpha.astype(jnp.float32), 0.01, 0.99).reshape(1)
    b = (1.0 + jax.nn.sigmoid(beta.astype(jnp.float32))).reshape(1)

    itemsize = jnp.dtype(dtype).itemsize
    quantum = _row_quantum(dtype)

    # Lane-aligned prefix goes through the Pallas kernel; a <128-element ragged tail
    # (if any) is handled with plain jnp to avoid whole-array pad/slice round trips.
    prefix = (total // _LANES) * _LANES
    if prefix == 0:
        return _arelu_elementwise(x, a[0], b[0]).reshape(orig_shape)

    flat = x.reshape(-1)
    head = flat if prefix == total else flat[:prefix]
    nrows = prefix // _LANES
    x2d = head.reshape(nrows, _LANES)        # zero-copy when total % 128 == 0

    # Tile rows: ~4 MiB per buffer, rounded to the sublane quantum; keep >=2 grid steps
    # when the input allows it so v7x can shard across both TensorCores.
    max_rows = max(quantum, (_TILE_BYTES // (_LANES * itemsize)) // quantum * quantum)
    if nrows < quantum:
        tile_r = nrows                       # block == full array dim (allowed)
    else:
        half = -(-nrows // 2)                # ceil(nrows / 2)
        half = -(-half // quantum) * quantum # round up to quantum
        tile_r = max(quantum, min(max_rows, half))
    grid = (pl.cdiv(nrows, tile_r),)

    out2d = pl.pallas_call(
        _arelu_kernel,
        out_shape=jax.ShapeDtypeStruct((nrows, _LANES), dtype),
        grid_spec=pltpu.PrefetchScalarGridSpec(
            num_scalar_prefetch=0,
            grid=grid,
            in_specs=[
                pl.BlockSpec(memory_space=pltpu.SMEM),             # alpha (1,) f32
                pl.BlockSpec(memory_space=pltpu.SMEM),             # beta  (1,) f32
                pl.BlockSpec((tile_r, _LANES), lambda i: (i, 0)),  # x tile
            ],
            out_specs=pl.BlockSpec((tile_r, _LANES), lambda i: (i, 0)),
        ),
        compiler_params=pltpu.CompilerParams(
            dimension_semantics=("parallel",),   # shard tiles across TCs on v7x
            vmem_limit_bytes=_VMEM_LIMIT,
        ),
        cost_estimate=pl.CostEstimate(
            flops=2 * prefix,
            transcendentals=0,
            bytes_accessed=2 * prefix * itemsize,
        ),
    )(a, b, x2d)

    out_flat = out2d.reshape(-1)
    if prefix != total:
        tail = _arelu_elementwise(flat[prefix:], a[0], b[0])
        out_flat = jnp.concatenate([out_flat, tail])
    return out_flat.reshape(orig_shape)


def arelu_reference(x, alpha, beta):
    a = jnp.clip(alpha, 0.01, 0.99)
    b = 1.0 + jax.nn.sigmoid(beta)
    return jnp.maximum(x, 0.0) * b - jnp.maximum(-x, 0.0) * a


if __name__ == "__main__":
    key = jax.random.PRNGKey(0)
    x = jax.random.normal(key, (2, 4, 16, 16), dtype=jnp.float32)

    # deterministic parameter init, matching nn.Parameter(torch.tensor([0.9])) etc.
    alpha = jnp.array([0.9], dtype=jnp.float32)
    beta = jnp.array([2.0], dtype=jnp.float32)

    out = arelu(x, alpha, beta)
    jax.block_until_ready(out)

    ref = arelu_reference(x, alpha, beta)
    assert out.shape == x.shape and out.dtype == x.dtype
    assert jnp.allclose(out, ref, atol=1e-6, rtol=1e-6)
    print("KERNEL_OK")
</pallas_src>

<mosaic_0001>
module attributes {stable_mosaic.version = 11 : i64} {
  func.func @_arelu_kernel(%arg0: i32, %arg1: memref<1xf32, #tpu.memory_space<smem>>, %arg2: memref<1xf32, #tpu.memory_space<smem>>, %arg3: memref<8x128xf32, #tpu.memory_space<vmem>>, %arg4: memref<8x128xf32, #tpu.memory_space<vmem>>) attributes {dimension_semantics = [#tpu.dimension_semantics<parallel>], iteration_bounds = array<i64: 2>, scalar_prefetch = 0 : i64, scratch_operands = 0 : i64, tpu.core_type = #tpu.core_type<tc>, window_params = [{transform_indices = @transform_0, window_bounds = array<i64: 1>}, {transform_indices = @transform_1, window_bounds = array<i64: 1>}, {transform_indices = @transform_2, window_bounds = array<i64: 8, 128>}, {transform_indices = @transform_3, window_bounds = array<i64: 8, 128>}]} {
    %c0 = arith.constant 0 : index
    %c0_0 = arith.constant 0 : index
    %0 = vector.load %arg3[%c0, %c0_0] : memref<8x128xf32, #tpu.memory_space<vmem>>, vector<8x128xf32>
    %c0_1 = arith.constant 0 : index
    %1 = memref.load %arg1[%c0_1] : memref<1xf32, #tpu.memory_space<smem>>
    %c0_2 = arith.constant 0 : index
    %2 = memref.load %arg2[%c0_2] : memref<1xf32, #tpu.memory_space<smem>>
    %cst = arith.constant 0.000000e+00 : f32
    %3 = vector.broadcast %cst : f32 to vector<8x128xf32>
    %4 = arith.cmpf oge, %0, %3 : vector<8x128xf32>
    %5 = vector.broadcast %2 : f32 to vector<8x128xf32>
    %6 = vector.broadcast %1 : f32 to vector<8x128xf32>
    %7 = arith.select %4, %5, %6 : vector<8x128xi1>, vector<8x128xf32>
    %8 = arith.mulf %0, %7 : vector<8x128xf32>
    %c0_3 = arith.constant 0 : index
    %c0_4 = arith.constant 0 : index
    %9 = vector.load %arg4[%c0_3, %c0_4] : memref<8x128xf32, #tpu.memory_space<vmem>>, vector<8x128xf32>
    tpu.vector_store %arg4[%c0_3, %c0_4], %8 {strides = array<i32>} : memref<8x128xf32, #tpu.memory_space<vmem>>, vector<8x128xf32>,
    return
  }
  func.func @transform_0(%arg0: i32) -> i32 {
    %c0_i32 = arith.constant 0 : i32
    %c0_i32_0 = arith.constant 0 : i32
    return %c0_i32 : i32
  }
  func.func @transform_1(%arg0: i32) -> i32 {
    %c0_i32 = arith.constant 0 : i32
    %c0_i32_0 = arith.constant 0 : i32
    return %c0_i32 : i32
  }
  func.func @transform_2(%arg0: i32) -> (i32, i32) {
    %c0_i32 = arith.constant 0 : i32
    %c0_i32_0 = arith.constant 0 : i32
    return %arg0, %c0_i32 : i32, i32
  }
  func.func @transform_3(%arg0: i32) -> (i32, i32) {
    %c0_i32 = arith.constant 0 : i32
    %c0_i32_0 = arith.constant 0 : i32
    return %arg0, %c0_i32 : i32, i32
  }
}

</mosaic_0001>

<llo_original>
// kernel: arelu.1
$region0: #{arelu.1}
  #allocation0 [shape = 'u32[]', space=smem, size = 0x4, offset = 0x4, fixed_abs, tag = 'smem constant byte address 0x4 - core index']
  #allocation1 [shape = 'u32[144,128]{1,0:T(1,128)}', space=vmem, size = 0x12000, scoped, tag = 'internal scratch']
  #allocation2 [shape = 'f32[1]{0:T(128)S(6)}', space=smem, size = 0x200, scoped, tag = 'scoped memory for arelu.1']
  #allocation3 [shape = 'f32[1]{0:T(128)S(6)}', space=smem, size = 0x200, scoped, tag = 'scoped memory for arelu.1']
  %s0 = inlined_call_operand.<no memory space> [shape: f32[1], index: 0, kind: input, shape index: {}]
  %s1 = inlined_call_operand.<no memory space> [shape: f32[1], index: 1, kind: input, shape index: {}]
  %s2 = inlined_call_operand.vmem [shape: f32[16,128], index: 2, kind: input, shape index: {}]
  %s3 = inlined_call_operand.vmem [shape: f32[16,128], index: 3, kind: output, shape index: {}]
  %s4 = sld [smem:[#allocation0]]
  $region45: #{arelu.1} parent=0
    _
  %s6 = ssub.s32 1, %s4
  %s7 = scalar_select 0, %s6, %s4
  %8 = sst [smem:[#allocation2]] %s0
  %9 = sst [smem:[#allocation3]] %s1
  loop: start=0, step=1, limit=4
  $region2: #{arelu.1} parent=0 // loop_pre_header
    _
  $region3: #{arelu.1} parent=0 // loop_header
    %s11 = sphi 0, %s15
    %p12 = scmp.ge.s32.totalorder %s11, 4
    %s19 = sphi 0, %s19
    %s21 = sphi 0, %s19
    %s22 = sphi 0, %s21
    %s36 = sphi 0, %s22
    %s40 = sphi 0, %s40
    %s42 = sphi 0, %s40
    %s43 = sphi 0, %s42
    %s57 = sphi 0, %s43
    %s63 = sphi 0, %s65
    %s66 = sphi 0, %s63
    %s67 = sphi 0, %s66
    %s83 = sphi 0, %s67
    %s89 = sphi 0, %s91
    %s92 = sphi 0, %s89
    %s93 = sphi 0, %s92
    %s109 = sphi 0, %s93
  $region4: #{arelu.1} parent=0 // loop_header_branch
    %14 = sbr.rel (%p12) target = $region8
  $region5: #{arelu.1} parent=0 // loop_body
    %s16 = ssub.s32 %s11, 1
    %s17 = ssub.s32 %s11, 2
    %s18 = sadd.s32 %s11, 1
    %s20 = sadd.s32 %s19, 1
    %p23 = scmp.eq.s32.totalorder %s11, 1
    %p24 = scmp.ne.s32.totalorder %s19, %s21
    %p25 = scmp.eq.s32.totalorder %s11, 0
    %p26 = por %p24, %p25
    %p27 = scmp.ne.s32.totalorder %s19, %s21
    %p28 = scmp.eq.s32.totalorder %s16, 1
    %p29 = por %p27, %p28
    %p30 = scmp.ne.s32.totalorder %s21, %s22
    %p31 = scmp.eq.s32.totalorder %s16, 0
    %p32 = por %p30, %p31
    %p33 = scmp.ne.s32.totalorder %s21, %s22
    %p34 = scmp.eq.s32.totalorder %s17, 1
    %p35 = por %p33, %p34
    %p37 = scmp.ne.s32.totalorder %s22, %s36
    %p38 = scmp.eq.s32.totalorder %s17, 0
    %p39 = por %p37, %p38
    %s41 = sadd.s32 %s40, 1
    %p44 = scmp.eq.s32.totalorder %s11, 1
    %p45 = scmp.ne.s32.totalorder %s40, %s42
    %p46 = scmp.eq.s32.totalorder %s11, 0
    %p47 = por %p45, %p46
    %p48 = scmp.ne.s32.totalorder %s40, %s42
    %p49 = scmp.eq.s32.totalorder %s16, 1
    %p50 = por %p48, %p49
    %p51 = scmp.ne.s32.totalorder %s42, %s43
    %p52 = scmp.eq.s32.totalorder %s16, 0
    %p53 = por %p51, %p52
    %p54 = scmp.ne.s32.totalorder %s42, %s43
    %p55 = scmp.eq.s32.totalorder %s17, 1
    %p56 = por %p54, %p55
    %p58 = scmp.ne.s32.totalorder %s43, %s57
    %p59 = scmp.eq.s32.totalorder %s17, 0
    %p60 = por %p58, %p59
    %s61 = ssub.s32 %s11, %s18
    %p62 = scmp.eq.s32.totalorder %s61, 0
    %s64 = sadd.s32 %s63, 1
    %s65 = scalar_select %p62, %s63, %s64
    %p68 = pneg %p62
    %p69 = scmp.eq.s32.totalorder %s11, 1
    %p70 = por %p68, %p69
    %p71 = scmp.ne.s32.totalorder %s63, %s66
    %p72 = scmp.eq.s32.totalorder %s11, 0
    %p73 = por %p71, %p72
    %p74 = scmp.ne.s32.totalorder %s63, %s66
    %p75 = scmp.eq.s32.totalorder %s16, 1
    %p76 = por %p74, %p75
    %p77 = scmp.ne.s32.totalorder %s66, %s67
    %p78 = scmp.eq.s32.totalorder %s16, 0
    %p79 = por %p77, %p78
    %p80 = scmp.ne.s32.totalorder %s66, %s67
    %p81 = scmp.eq.s32.totalorder %s17, 1
    %p82 = por %p80, %p81
    %p84 = scmp.ne.s32.totalorder %s67, %s83
    %p85 = scmp.eq.s32.totalorder %s17, 0
    %p86 = por %p84, %p85
    %s87 = ssub.s32 %s11, %s18
    %p88 = scmp.eq.s32.totalorder %s87, 0
    %s90 = sadd.s32 %s89, 1
    %s91 = scalar_select %p88, %s89, %s90
    %p94 = pneg %p88
    %p95 = scmp.eq.s32.totalorder %s11, 1
    %p96 = por %p94, %p95
    %p97 = scmp.ne.s32.totalorder %s89, %s92
    %p98 = scmp.eq.s32.totalorder %s11, 0
    %p99 = por %p97, %p98
    %p100 = scmp.ne.s32.totalorder %s89, %s92
    %p101 = scmp.eq.s32.totalorder %s16, 1
    %p102 = por %p100, %p101
    %p103 = scmp.ne.s32.totalorder %s92, %s93
    %p104 = scmp.eq.s32.totalorder %s16, 0
    %p105 = por %p103, %p104
    %p106 = scmp.ne.s32.totalorder %s92, %s93
    %p107 = scmp.eq.s32.totalorder %s17, 1
    %p108 = por %p106, %p107
    %p110 = scmp.ne.s32.totalorder %s93, %s109
    %p111 = scmp.eq.s32.totalorder %s17, 0
    %p112 = por %p110, %p111
    %p113 = scmp.le.s32.totalorder 1, %s11
    %p114 = scmp.lt.s32.totalorder %s11, 3
    %p115 = pnand %p113, %p114
    %p116 = pneg %p115
    // Predicated region
    $region9: #{arelu.1} parent=5 // pred_check
      _
    $region10: #{arelu.1} parent=5 // pred_check_branch
      %118 = sbr.rel (%p115) target = $region12
    $region11: #{arelu.1} parent=5 // pred_region
      %s119 = ssub.s32 %s11, 1
      // Predicated region
      $region13: #{arelu.1} parent=11 // pred_check
        %p120 = pneg %p32
      $region14: #{arelu.1} parent=11 // pred_check_branch
        %122 = sbr.rel (%p120) target = $region16
      $region15: #{arelu.1} parent=11 // pred_region
        _
      $region16: #{arelu.1} parent=11 // pred_fallthru
        _
      // Predicated region
      $region17: #{arelu.1} parent=11 // pred_check
        %p123 = pneg %p53
      $region18: #{arelu.1} parent=11 // pred_check_branch
        %125 = sbr.rel (%p123) target = $region20
      $region19: #{arelu.1} parent=11 // pred_region
        _
      $region20: #{arelu.1} parent=11 // pred_fallthru
        _
    $region12: #{arelu.1} parent=5 // pred_fallthru
      _
    %p126 = scmp.lt.s32.totalorder %s11, 2
    // Predicated region
    $region21: #{arelu.1} parent=5 // pred_check
      %p127 = pneg %p126
    $region22: #{arelu.1} parent=5 // pred_check_branch
      %129 = sbr.rel (%p127) target = $region24
    $region23: #{arelu.1} parent=5 // pred_region
      // Predicated region
      $region25: #{arelu.1} parent=23 // pred_check
        %p130 = pneg %p73
      $region26: #{arelu.1} parent=23 // pred_check_branch
        %132 = sbr.rel (%p130) target = $region28
      $region27: #{arelu.1} parent=23 // pred_region
        %p133 = scmp.lt.s32.totalorder %s11, 1
        %s134 = scalar_select %p133, %s11, 1
        %s135 = smul.addr %s134, 8
        %s136 = scalar_lea.vmem %s2, %s135
      $region28: #{arelu.1} parent=23 // pred_fallthru
        _
    $region24: #{arelu.1} parent=5 // pred_fallthru
      _
    %p137 = scmp.le.s32.totalorder 1, %s11
    %p138 = scmp.lt.s32.totalorder %s11, 3
    %p139 = pnand %p137, %p138
    %p140 = pneg %p139
    // Predicated region
    $region29: #{arelu.1} parent=5 // pred_check
      _
    $region30: #{arelu.1} parent=5 // pred_check_branch
      %142 = sbr.rel (%p139) target = $region32
    $region31: #{arelu.1} parent=5 // pred_region
      %s143 = ssub.s32 %s11, 1
      %p144 = pneg %p32
      %p145 = pneg %p29
      %p146 = pneg %p53
      %p147 = pneg %p50
      %p148 = scmp.lt.s32.totalorder %s16, 1
      %s149 = scalar_select %p148, %s16, 1
      %s150 = smul.addr %s149, 8
      %s151 = scalar_lea.vmem %s2, %s150
      %p152 = pneg %p79
      %p153 = pneg %p76
      %p154 = pneg %p105
      %p155 = pneg %p102
      %p156 = scmp.lt.s32.totalorder %s16, 1
      %s157 = scalar_select %p156, %s16, 1
      %s158 = smul.addr %s157, 8
      %s159 = scalar_lea.vmem %s3, %s158
      %p160 = scmp.lt.s32.totalorder %s16, 1
      %s161 = scalar_select %p160, %s16, 1
      %s162 = smul.addr %s161, 8
      %s163 = scalar_lea.vmem %s2, %s162
      %p164 = scmp.lt.s32.totalorder %s16, 1
      %s165 = scalar_select %p164, %s16, 1
      %s166 = smul.addr %s165, 8
      %s167 = scalar_lea.vmem %s3, %s166
      %v168 = vld [vmem:[%s163] sm:$0xff]
      %s169 = sld [smem:[#allocation2]]
      %s170 = sld [smem:[#allocation3]]
      %vm171 = vcmp.ge.f32.partialorder %v168, 0.0
      %v172 = vstv %s170
      %v173 = vstv %s169
      %v174 = vsel %vm171, %v172, %v173
      %v175 = vmul.f32 %v168, %v174
      %176 = vst [vmem:[%s167] sm:$0xff] %v175
      %p177 = scmp.lt.s32.totalorder %s16, 1
      %s178 = scalar_select %p177, %s16, 1
      %s179 = smul.addr %s178, 8
      %s180 = scalar_lea.vmem %s3, %s179
      // Predicated region
      $region33: #{arelu.1} parent=31 // pred_check
        %p181 = pneg %p102
      $region34: #{arelu.1} parent=31 // pred_check_branch
        %183 = sbr.rel (%p181) target = $region36
      $region35: #{arelu.1} parent=31 // pred_region
        _
      $region36: #{arelu.1} parent=31 // pred_fallthru
        _
    $region32: #{arelu.1} parent=5 // pred_fallthru
      _
    %p184 = scmp.le.s32.totalorder 2, %s11
    // Predicated region
    $region37: #{arelu.1} parent=5 // pred_check
      %p185 = pneg %p184
    $region38: #{arelu.1} parent=5 // pred_check_branch
      %187 = sbr.rel (%p185) target = $region40
    $region39: #{arelu.1} parent=5 // pred_region
      %s188 = ssub.s32 %s11, 2
      // Predicated region
      $region41: #{arelu.1} parent=39 // pred_check
        %p189 = pneg %p108
      $region42: #{arelu.1} parent=39 // pred_check_branch
        %191 = sbr.rel (%p189) target = $region44
      $region43: #{arelu.1} parent=39 // pred_region
        %p192 = scmp.lt.s32.totalorder %s17, 1
        %s193 = scalar_select %p192, %s17, 1
        %s194 = smul.addr %s193, 8
        %s195 = scalar_lea.vmem %s3, %s194
      $region44: #{arelu.1} parent=39 // pred_fallthru
        _
    $region40: #{arelu.1} parent=5 // pred_fallthru
      _
  $region6: #{arelu.1} parent=0 // loop_footer
    %s15 = sadd.s32 1, %s11
  $region7: #{arelu.1} parent=0 // loop_footer_branch
    %10 = sbr.rel target = $region3
  $region8: #{arelu.1} parent=0 // loop_exit
    _

</llo_original>
